<compile_context>
chip_gen: v7x
topology: tpu7x:2x2x1
jax: 0.10.0
libtpu: 0.0.40
codegen_flags: <defaults>
</compile_context>

<pallas_src>
import jax
import jax.numpy as jnp
from jax.experimental import pallas as pl
from jax.experimental.pallas import tpu as pltpu


def mlp_kernel(x_ref, w_ref, b_ref, o_ref):
    # Linear: x @ W + b  (MXU, f32 accumulation)
    h = jnp.dot(x_ref[...], w_ref[...], preferred_element_type=jnp.float32)
    h = h + b_ref[...].astype(jnp.float32)          # broadcast (1, N) over rows
    # Activation: ReLU
    h = jnp.maximum(h, 0.0)
    # F.normalize(h, p=2, dim=1): h / max(||h||_2, 1e-12)
    sq = jnp.sum(h * h, axis=1, keepdims=True)
    inv = jax.lax.rsqrt(jnp.maximum(sq, 1e-24))     # EUP rsqrt; == 1/max(norm,1e-12)
    o_ref[...] = (h * inv).astype(o_ref.dtype)


def _round_up(v, m):
    return (v + m - 1) // m * m


def mlp_forward(x, w, b, *, tm=256):
    """x: (batch, in_dim), w: (in_dim, out_dim), b: (1, out_dim)."""
    batch, in_dim = x.shape
    out_dim = w.shape[1]

    # Lane-dense feature dims (multiples of 128), sublane-aligned batch tile.
    k_pad = _round_up(in_dim, 128)
    n_pad = _round_up(out_dim, 128)
    tm = min(tm, _round_up(batch, 8))               # largest tile <= requested TM
    m_pad = _round_up(batch, tm)

    if (m_pad, k_pad) != (batch, in_dim):
        x = jnp.pad(x, ((0, m_pad - batch), (0, k_pad - in_dim)))
    if (k_pad, n_pad) != (in_dim, out_dim):
        w = jnp.pad(w, ((0, k_pad - in_dim), (0, n_pad - out_dim)))
    if n_pad != out_dim:
        b = jnp.pad(b, ((0, 0), (0, n_pad - out_dim)))

    grid = (m_pad // tm,)
    itemsize = jnp.dtype(x.dtype).itemsize
    cost = pl.CostEstimate(
        flops=2 * m_pad * k_pad * n_pad,
        bytes_accessed=(m_pad * k_pad + k_pad * n_pad + n_pad + m_pad * n_pad)
        * itemsize,
        transcendentals=m_pad,                      # one rsqrt per row
    )

    out = pl.pallas_call(
        mlp_kernel,
        out_shape=jax.ShapeDtypeStruct((m_pad, n_pad), x.dtype),
        grid_spec=pltpu.PrefetchScalarGridSpec(
            num_scalar_prefetch=0,
            grid=grid,
            in_specs=[
                pl.BlockSpec((tm, k_pad), lambda i: (i, 0)),    # x: tiled batch
                pl.BlockSpec((k_pad, n_pad), lambda i: (0, 0)),  # W: resident
                pl.BlockSpec((1, n_pad), lambda i: (0, 0)),      # b: resident
            ],
            out_specs=pl.BlockSpec((tm, n_pad), lambda i: (i, 0)),
        ),
        compiler_params=pltpu.CompilerParams(
            dimension_semantics=("parallel",),      # shard batch across TCs (v7x)
            vmem_limit_bytes=64 * 1024 * 1024,
        ),
        cost_estimate=cost,
    )(x, w, b)

    return out[:batch, :out_dim]


def mlp_reference(x, w, b):
    h = x @ w + b
    h = jnp.maximum(h, 0.0)
    norm = jnp.sqrt(jnp.sum(h * h, axis=1, keepdims=True))
    return h / jnp.maximum(norm, 1e-12)


if __name__ == "__main__":
    key = jax.random.PRNGKey(0)

    def make_case(kcase, batch, in_dim, out_dim):
        kx, kw, kb = jax.random.split(kcase, 3)
        bound = 1.0 / (in_dim ** 0.5)
        w = jax.random.uniform(kw, (in_dim, out_dim), jnp.float32, -bound, bound)
        b = jax.random.uniform(kb, (1, out_dim), jnp.float32, -bound, bound)
        x = jax.random.normal(kx, (batch, in_dim), jnp.float32)
        return x, w, b

    k1, k2 = jax.random.split(key)

    # Lane-dense case (preferred shapes: multiples of 128 / sublane-aligned batch).
    x, w, b = make_case(k1, 256, 128, 128)
    out = jax.block_until_ready(mlp_forward(x, w, b))
    ref = mlp_reference(x, w, b)
    assert out.shape == ref.shape
    assert jnp.allclose(out, ref, atol=1e-5, rtol=1e-5)

    # Unaligned case to exercise the padding path (matches the original toy sizes).
    x2, w2, b2 = make_case(k2, 8, 32, 64)
    out2 = jax.block_until_ready(mlp_forward(x2, w2, b2))
    ref2 = mlp_reference(x2, w2, b2)
    assert out2.shape == ref2.shape
    assert jnp.allclose(out2, ref2, atol=1e-5, rtol=1e-5)

    print("KERNEL_OK")
</pallas_src>

<mosaic_0001>
module attributes {stable_mosaic.version = 11 : i64} {
  func.func @mlp_kernel(%arg0: i32, %arg1: memref<256x128xf32, #tpu.memory_space<vmem>>, %arg2: memref<128x128xf32, #tpu.memory_space<vmem>>, %arg3: memref<1x128xf32, #tpu.memory_space<vmem>>, %arg4: memref<256x128xf32, #tpu.memory_space<vmem>>) attributes {dimension_semantics = [#tpu.dimension_semantics<parallel>], iteration_bounds = array<i64: 1>, scalar_prefetch = 0 : i64, scratch_operands = 0 : i64, tpu.core_type = #tpu.core_type<tc>, window_params = [{transform_indices = @transform_0, window_bounds = array<i64: 256, 128>}, {pipeline_mode = #tpu.pipeline_mode<synchronous>, transform_indices = @transform_1, window_bounds = array<i64: 128, 128>}, {pipeline_mode = #tpu.pipeline_mode<synchronous>, transform_indices = @transform_2, window_bounds = array<i64: 1, 128>}, {transform_indices = @transform_3, window_bounds = array<i64: 256, 128>}]} {
    %c0 = arith.constant 0 : index
    %c0_0 = arith.constant 0 : index
    %0 = vector.load %arg1[%c0, %c0_0] : memref<256x128xf32, #tpu.memory_space<vmem>>, vector<256x128xf32>
    %c0_1 = arith.constant 0 : index
    %c0_2 = arith.constant 0 : index
    %1 = vector.load %arg2[%c0_1, %c0_2] : memref<128x128xf32, #tpu.memory_space<vmem>>, vector<128x128xf32>
    %cst = arith.constant dense<0.000000e+00> : vector<256x128xf32>
    %2 = tpu.matmul %0, %1, %cst {dimension_numbers = #tpu.dot_dimension_numbers<[1], [0], [0], [1], [0, 0, 1, 1], [], []>} : vector<256x128xf32>, vector<128x128xf32>, vector<256x128xf32> -> vector<256x128xf32>
    %c0_3 = arith.constant 0 : index
    %c0_4 = arith.constant 0 : index
    %3 = vector.load %arg3[%c0_3, %c0_4] : memref<1x128xf32, #tpu.memory_space<vmem>>, vector<1x128xf32>
    %4 = vector.broadcast %3 : vector<1x128xf32> to vector<256x128xf32>
    %5 = arith.addf %2, %4 : vector<256x128xf32>
    %cst_5 = arith.constant 0.000000e+00 : f32
    %6 = vector.broadcast %cst_5 : f32 to vector<256x128xf32>
    %7 = arith.maximumf %5, %6 : vector<256x128xf32>
    %8 = arith.mulf %7, %7 : vector<256x128xf32>
    %cst_6 = arith.constant dense<0.000000e+00> : vector<256xf32>
    %9 = vector.multi_reduction <add>, %8, %cst_6 [1] : vector<256x128xf32> to vector<256xf32>
    %10 = vector.shape_cast %9 : vector<256xf32> to vector<256x1xf32>
    %cst_7 = arith.constant 1.000000e-24 : f32
    %11 = vector.broadcast %cst_7 : f32 to vector<256x1xf32>
    %12 = arith.maximumf %10, %11 : vector<256x1xf32>
    %13 = math.rsqrt %12 : vector<256x1xf32>
    %14 = vector.broadcast %13 : vector<256x1xf32> to vector<256x128xf32>
    %15 = arith.mulf %7, %14 : vector<256x128xf32>
    %c0_8 = arith.constant 0 : index
    %c0_9 = arith.constant 0 : index
    %16 = vector.load %arg4[%c0_8, %c0_9] : memref<256x128xf32, #tpu.memory_space<vmem>>, vector<256x128xf32>
    tpu.vector_store %arg4[%c0_8, %c0_9], %15 {strides = array<i32>} : memref<256x128xf32, #tpu.memory_space<vmem>>, vector<256x128xf32>,
    return
  }
  func.func @transform_0(%arg0: i32) -> (i32, i32) {
    %c0_i32 = arith.constant 0 : i32
    %c0_i32_0 = arith.constant 0 : i32
    return %arg0, %c0_i32 : i32, i32
  }
  func.func @transform_1(%arg0: i32) -> (i32, i32) {
    %c0_i32 = arith.constant 0 : i32
    %c0_i32_0 = arith.constant 0 : i32
    %c0_i32_1 = arith.constant 0 : i32
    return %c0_i32, %c0_i32_0 : i32, i32
  }
  func.func @transform_2(%arg0: i32) -> (i32, i32) {
    %c0_i32 = arith.constant 0 : i32
    %c0_i32_0 = arith.constant 0 : i32
    %c0_i32_1 = arith.constant 0 : i32
    return %c0_i32, %c0_i32_0 : i32, i32
  }
  func.func @transform_3(%arg0: i32) -> (i32, i32) {
    %c0_i32 = arith.constant 0 : i32
    %c0_i32_0 = arith.constant 0 : i32
    return %arg0, %c0_i32 : i32, i32
  }
}

</mosaic_0001>

<llo_original>
// kernel: tpu_custom_call.1
$region0: #{tpu_custom_call.1}
  #allocation0 [shape = 'u32[]', space=smem, size = 0x4, offset = 0x4, fixed_abs, tag = 'smem constant byte address 0x4 - core index']
  #allocation1 [shape = 'u32[144,128]{1,0:T(1,128)}', space=vmem, size = 0x12000, scoped, tag = 'internal scratch']
  %s0 = inlined_call_operand.hbm [shape: f32[256,128], index: 0, kind: input, shape index: {}]
  %s1 = inlined_call_operand.hbm [shape: f32[128,128], index: 1, kind: input, shape index: {}]
  %s2 = inlined_call_operand.hbm [shape: f32[1,128], index: 2, kind: input, shape index: {}]
  %s3 = inlined_call_operand.hbm [shape: f32[256,128], index: 3, kind: output, shape index: {}]
  %s4 = sld [smem:[#allocation0]]
  $region34: #{tpu_custom_call.1} parent=0
    _
  %s6 = ssub.s32 1, %s4
  %s7 = scalar_select 0, %s6, %s4
  $region1: #{tpu_custom_call.1} parent=0
    #allocation2 [shape = 'u8[131072]{0}', space=vmem, size = 0x20000, scoped, tag = 'input window, operand 0, single buffered']
    #allocation3 [shape = 's32[1]{0}', space=sflag, size = 0x4, scoped, tag = 'scoped memory for tpu_custom_call.1']
    #allocation4 [shape = 's32[1]{0}', space=sflag, size = 0x4, scoped, tag = 'scoped memory for tpu_custom_call.1']
    #allocation5 [shape = 'u8[65536]{0}', space=vmem, size = 0x10000, scoped, tag = 'input window, operand 1, single buffered']
    #allocation6 [shape = 's32[1]{0}', space=sflag, size = 0x4, scoped, tag = 'scoped memory for tpu_custom_call.1']
    #allocation7 [shape = 'u8[512]{0}', space=vmem, size = 0x400, scoped, tag = 'input window, operand 2, single buffered']
    #allocation8 [shape = 'u8[131072]{0}', space=vmem, size = 0x20000, scoped, tag = 'output window, operand 0, single buffered']
    %8 = vsyncpa [#allocation3], 0
    %9 = vsyncpa [#allocation6], 0
    %10 = vsyncpa [#allocation4], 0
    // Predicated region
    $region2: #{tpu_custom_call.1} parent=1 // pred_check
      _
    $region3: #{tpu_custom_call.1} parent=1 // pred_check_branch
      %12 = sbr.rel (0) target = $region5
    $region4: #{tpu_custom_call.1} parent=1 // pred_region
      %s14 = ssub.s32 4096, 4096
      %15 = vsyncadd [#allocation3], %s14
      %s16 = sshll.u32 [#allocation2], 4
      %s17 = int_to_ptr.vmem [resolvable:$true] %s16
      %22 = dma.hbm_to_vmem [thread:$0]  %s0, 4096, %s17, [#allocation3], 128, 128, 8
    $region5: #{tpu_custom_call.1} parent=1 // pred_fallthru
      _
    // Predicated region
    $region6: #{tpu_custom_call.1} parent=1 // pred_check
      _
    $region7: #{tpu_custom_call.1} parent=1 // pred_check_branch
      %24 = sbr.rel (0) target = $region9
    $region8: #{tpu_custom_call.1} parent=1 // pred_region
      %s26 = ssub.s32 2048, 2048
      %27 = vsyncadd [#allocation6], %s26
      %s28 = sshll.u32 [#allocation5], 4
      %s29 = int_to_ptr.vmem [resolvable:$true] %s28
      %34 = dma.hbm_to_vmem [thread:$0]  %s1, 2048, %s29, [#allocation6], 128, 128, 8
    $region9: #{tpu_custom_call.1} parent=1 // pred_fallthru
      _
    // Predicated region
    $region10: #{tpu_custom_call.1} parent=1 // pred_check
      _
    $region11: #{tpu_custom_call.1} parent=1 // pred_check_branch
      %36 = sbr.rel (0) target = $region13
    $region12: #{tpu_custom_call.1} parent=1 // pred_region
      %s38 = ssub.s32 16, 16
      %39 = vsyncadd [#allocation6], %s38
      %s41 = sshll.u32 [#allocation7], 4
      %s42 = int_to_ptr.vmem [resolvable:$true] %s41
      %44 = dma.hbm_to_vmem [thread:$0]  %s2, 16, %s42, [#allocation6]
    $region13: #{tpu_custom_call.1} parent=1 // pred_fallthru
      _
    // Predicated region
    $region14: #{tpu_custom_call.1} parent=1 // pred_check
      _
    $region15: #{tpu_custom_call.1} parent=1 // pred_check_branch
      %46 = sbr.rel (0) target = $region17
    $region16: #{tpu_custom_call.1} parent=1 // pred_region
      %47 = dma.done [#allocation3], 4096
    $region17: #{tpu_custom_call.1} parent=1 // pred_fallthru
      _
    // Predicated region
    $region18: #{tpu_custom_call.1} parent=1 // pred_check
      _
    $region19: #{tpu_custom_call.1} parent=1 // pred_check_branch
      %49 = sbr.rel (0) target = $region21
    $region20: #{tpu_custom_call.1} parent=1 // pred_region
      %50 = dma.done [#allocation6], 2048
    $region21: #{tpu_custom_call.1} parent=1 // pred_fallthru
      _
    // Predicated region
    $region22: #{tpu_custom_call.1} parent=1 // pred_check
      _
    $region23: #{tpu_custom_call.1} parent=1 // pred_check_branch
      %52 = sbr.rel (0) target = $region25
    $region24: #{tpu_custom_call.1} parent=1 // pred_region
      %53 = dma.done [#allocation6], 16
    $region25: #{tpu_custom_call.1} parent=1 // pred_fallthru
      _
    %v54 = vld [vmem:[#allocation2] sm:$0xff]
    %v55 = vld [vmem:[#allocation2 + $0x8] sm:$0xff]
    %v56 = vld [vmem:[#allocation2 + $0x10] sm:$0xff]
    %v57 = vld [vmem:[#allocation2 + $0x18] sm:$0xff]
    %v58 = vld [vmem:[#allocation2 + $0x20] sm:$0xff]
    %v59 = vld [vmem:[#allocation2 + $0x28] sm:$0xff]
    %v60 = vld [vmem:[#allocation2 + $0x30] sm:$0xff]
    %v61 = vld [vmem:[#allocation2 + $0x38] sm:$0xff]
    %v62 = vld [vmem:[#allocation2 + $0x40] sm:$0xff]
    %v63 = vld [vmem:[#allocation2 + $0x48] sm:$0xff]
    %v64 = vld [vmem:[#allocation2 + $0x50] sm:$0xff]
    %v65 = vld [vmem:[#allocation2 + $0x58] sm:$0xff]
    %v66 = vld [vmem:[#allocation2 + $0x60] sm:$0xff]
    %v67 = vld [vmem:[#allocation2 + $0x68] sm:$0xff]
    %v68 = vld [vmem:[#allocation2 + $0x70] sm:$0xff]
    %v69 = vld [vmem:[#allocation2 + $0x78] sm:$0xff]
    %v70 = vld [vmem:[#allocation2 + $0x80] sm:$0xff]
    %v71 = vld [vmem:[#allocation2 + $0x88] sm:$0xff]
    %v72 = vld [vmem:[#allocation2 + $0x90] sm:$0xff]
    %v73 = vld [vmem:[#allocation2 + $0x98] sm:$0xff]
    %v74 = vld [vmem:[#allocation2 + $0xa0] sm:$0xff]
    %v75 = vld [vmem:[#allocation2 + $0xa8] sm:$0xff]
    %v76 = vld [vmem:[#allocation2 + $0xb0] sm:$0xff]
    %v77 = vld [vmem:[#allocation2 + $0xb8] sm:$0xff]
    %v78 = vld [vmem:[#allocation2 + $0xc0] sm:$0xff]
    %v79 = vld [vmem:[#allocation2 + $0xc8] sm:$0xff]
    %v80 = vld [vmem:[#allocation2 + $0xd0] sm:$0xff]
    %v81 = vld [vmem:[#allocation2 + $0xd8] sm:$0xff]
    %v82 = vld [vmem:[#allocation2 + $0xe0] sm:$0xff]
    %v83 = vld [vmem:[#allocation2 + $0xe8] sm:$0xff]
    %v84 = vld [vmem:[#allocation2 + $0xf0] sm:$0xff]
    %v85 = vld [vmem:[#allocation2 + $0xf8] sm:$0xff]
    %v86 = vld [vmem:[#allocation5] sm:$0xff]
    %v87 = vld [vmem:[#allocation5 + $0x8] sm:$0xff]
    %v88 = vld [vmem:[#allocation5 + $0x10] sm:$0xff]
    %v89 = vld [vmem:[#allocation5 + $0x18] sm:$0xff]
    %v90 = vld [vmem:[#allocation5 + $0x20] sm:$0xff]
    %v91 = vld [vmem:[#allocation5 + $0x28] sm:$0xff]
    %v92 = vld [vmem:[#allocation5 + $0x30] sm:$0xff]
    %v93 = vld [vmem:[#allocation5 + $0x38] sm:$0xff]
    %v94 = vld [vmem:[#allocation5 + $0x40] sm:$0xff]
    %v95 = vld [vmem:[#allocation5 + $0x48] sm:$0xff]
    %v96 = vld [vmem:[#allocation5 + $0x50] sm:$0xff]
    %v97 = vld [vmem:[#allocation5 + $0x58] sm:$0xff]
    %v98 = vld [vmem:[#allocation5 + $0x60] sm:$0xff]
    %v99 = vld [vmem:[#allocation5 + $0x68] sm:$0xff]
    %v100 = vld [vmem:[#allocation5 + $0x70] sm:$0xff]
    %v101 = vld [vmem:[#allocation5 + $0x78] sm:$0xff]
    %v102 = vld [vmem:[#allocation7] sm:$0x1]
    %v104 = vlaneseq
    %v105 = vshrl.u32 %v104, 7
    %v106 = vsub.s32 0, %v105
    %v107 = vrot.slane %v102, %v106
    %109 = vmatprep.subr.mxu0 0.0
    %110 = vmatpush1.msra.mxu0 %v86
    %111 = vmatprep.subr.mxu0 0.0
    %112 = vmatpush1.msra.mxu0 %v87
    %113 = vmatprep.subr.mxu0 0.0
    %114 = vmatpush1.msra.mxu0 %v88
    %115 = vmatprep.subr.mxu0 0.0
    %116 = vmatpush1.msra.mxu0 %v89
    %117 = vmatprep.subr.mxu0 0.0
    %118 = vmatpush1.msra.mxu0 %v90
    %119 = vmatprep.subr.mxu0 0.0
    %120 = vmatpush1.msra.mxu0 %v91
    %121 = vmatprep.subr.mxu0 0.0
    %122 = vmatpush1.msra.mxu0 %v92
    %123 = vmatprep.subr.mxu0 0.0
    %124 = vmatpush1.msra.mxu0 %v93
    %125 = vmatprep.subr.mxu0 0.0
    %126 = vmatpush1.msra.mxu0 %v94
    %127 = vmatprep.subr.mxu0 0.0
    %128 = vmatpush1.msra.mxu0 %v95
    %129 = vmatprep.subr.mxu0 0.0
    %130 = vmatpush1.msra.mxu0 %v96
    %131 = vmatprep.subr.mxu0 0.0
    %132 = vmatpush1.msra.mxu0 %v97
    %133 = vmatprep.subr.mxu0 0.0
    %134 = vmatpush1.msra.mxu0 %v98
    %135 = vmatprep.subr.mxu0 0.0
    %136 = vmatpush1.msra.mxu0 %v99
    %137 = vmatprep.subr.mxu0 0.0
    %138 = vmatpush1.msra.mxu0 %v100
    %139 = vmatprep.subr.mxu0 0.0
    %140 = vmatpush1.msra.mxu0 %v101
    %141 = vmatprep.subr.mxu0 0.0
    %142 = vmatpush1.msra.mxu0 0.0
    %143 = vmatprep.subr.mxu0 0.0
    %144 = vmatpush1.msra.mxu0 0.0
    %145 = vmatprep.subr.mxu0 0.0
    %146 = vmatpush1.msra.mxu0 0.0
    %147 = vmatprep.subr.mxu0 0.0
    %148 = vmatpush1.msra.mxu0 0.0
    %149 = vmatprep.subr.mxu0 0.0
    %150 = vmatpush1.msra.mxu0 0.0
    %151 = vmatprep.subr.mxu0 0.0
    %152 = vmatpush1.msra.mxu0 0.0
    %153 = vmatprep.subr.mxu0 0.0
    %154 = vmatpush1.msra.mxu0 0.0
    %155 = vmatprep.subr.mxu0 0.0
    %156 = vmatpush1.msra.mxu0 0.0
    %157 = vmatprep.subr.mxu0 0.0
    %158 = vmatpush1.msra.mxu0 0.0
    %159 = vmatprep.subr.mxu0 0.0
    %160 = vmatpush1.msra.mxu0 0.0
    %161 = vmatprep.subr.mxu0 0.0
    %162 = vmatpush1.msra.mxu0 0.0
    %163 = vmatprep.subr.mxu0 0.0
    %164 = vmatpush1.msra.mxu0 0.0
    %165 = vmatprep.subr.mxu0 0.0
    %166 = vmatpush1.msra.mxu0 0.0
    %167 = vmatprep.subr.mxu0 0.0
    %168 = vmatpush1.msra.mxu0 0.0
    %169 = vmatprep.subr.mxu0 0.0
    %170 = vmatpush1.msra.mxu0 0.0
    %171 = vmatprep.subr.mxu0 0.0
    %172 = vmatpush1.msra.mxu0 0.0
    %173 = vmatprep.mubr.f32.mxu0 0.0
    %174 = vmatmul.mubr.f32.gmra.mrb[0].mxu0 %v54
    %v175 = vpop.f32.mrb[0].mxu0
    %v176 = vadd.f32 %v107, %v175
    %v177 = vpop.f32.mrb[0].mxu0
    %178 = vmatprep.mubr.f32.mxu0 0.0
    %179 = vmatmul.mubr.f32.gmra.mrb[0].mxu0 %v55
    %v180 = vpop.f32.mrb[0].mxu0
    %v181 = vadd.f32 %v107, %v180
    %v182 = vpop.f32.mrb[0].mxu0
    %183 = vmatprep.mubr.f32.mxu0 0.0
    %184 = vmatmul.mubr.f32.gmra.mrb[0].mxu0 %v56
    %v185 = vpop.f32.mrb[0].mxu0
    %v186 = vadd.f32 %v107, %v185
    %v187 = vpop.f32.mrb[0].mxu0
    %188 = vmatprep.mubr.f32.mxu0 0.0
    %189 = vmatmul.mubr.f32.gmra.mrb[0].mxu0 %v57
    %v190 = vpop.f32.mrb[0].mxu0
    %v191 = vadd.f32 %v107, %v190
    %v192 = vpop.f32.mrb[0].mxu0
    %193 = vmatprep.mubr.f32.mxu0 0.0
    %194 = vmatmul.mubr.f32.gmra.mrb[0].mxu0 %v58
    %v195 = vpop.f32.mrb[0].mxu0
    %v196 = vadd.f32 %v107, %v195
    %v197 = vpop.f32.mrb[0].mxu0
    %198 = vmatprep.mubr.f32.mxu0 0.0
    %199 = vmatmul.mubr.f32.gmra.mrb[0].mxu0 %v59
    %v200 = vpop.f32.mrb[0].mxu0
    %v201 = vadd.f32 %v107, %v200
    %v202 = vpop.f32.mrb[0].mxu0
    %203 = vmatprep.mubr.f32.mxu0 0.0
    %204 = vmatmul.mubr.f32.gmra.mrb[0].mxu0 %v60
    %v205 = vpop.f32.mrb[0].mxu0
    %v206 = vadd.f32 %v107, %v205
    %v207 = vpop.f32.mrb[0].mxu0
    %208 = vmatprep.mubr.f32.mxu0 0.0
    %209 = vmatmul.mubr.f32.gmra.mrb[0].mxu0 %v61
    %v210 = vpop.f32.mrb[0].mxu0
    %v211 = vadd.f32 %v107, %v210
    %v212 = vpop.f32.mrb[0].mxu0
    %213 = vmatprep.mubr.f32.mxu0 0.0
    %214 = vmatmul.mubr.f32.gmra.mrb[0].mxu0 %v62
    %v215 = vpop.f32.mrb[0].mxu0
    %v216 = vadd.f32 %v107, %v215
    %v217 = vpop.f32.mrb[0].mxu0
    %218 = vmatprep.mubr.f32.mxu0 0.0
    %219 = vmatmul.mubr.f32.gmra.mrb[0].mxu0 %v63
    %v220 = vpop.f32.mrb[0].mxu0
    %v221 = vadd.f32 %v107, %v220
    %v222 = vpop.f32.mrb[0].mxu0
    %223 = vmatprep.mubr.f32.mxu0 0.0
    %224 = vmatmul.mubr.f32.gmra.mrb[0].mxu0 %v64
    %v225 = vpop.f32.mrb[0].mxu0
    %v226 = vadd.f32 %v107, %v225
    %v227 = vpop.f32.mrb[0].mxu0
    %228 = vmatprep.mubr.f32.mxu0 0.0
    %229 = vmatmul.mubr.f32.gmra.mrb[0].mxu0 %v65
    %v230 = vpop.f32.mrb[0].mxu0
    %v231 = vadd.f32 %v107, %v230
    %v232 = vpop.f32.mrb[0].mxu0
    %233 = vmatprep.mubr.f32.mxu0 0.0
    %234 = vmatmul.mubr.f32.gmra.mrb[0].mxu0 %v66
    %v235 = vpop.f32.mrb[0].mxu0
    %v236 = vadd.f32 %v107, %v235
    %v237 = vpop.f32.mrb[0].mxu0
    %238 = vmatprep.mubr.f32.mxu0 0.0
    %239 = vmatmul.mubr.f32.gmra.mrb[0].mxu0 %v67
    %v240 = vpop.f32.mrb[0].mxu0
    %v241 = vadd.f32 %v107, %v240
    %v242 = vpop.f32.mrb[0].mxu0
    %243 = vmatprep.mubr.f32.mxu0 0.0
    %244 = vmatmul.mubr.f32.gmra.mrb[0].mxu0 %v68
    %v245 = vpop.f32.mrb[0].mxu0
    %v246 = vadd.f32 %v107, %v245
    %v247 = vpop.f32.mrb[0].mxu0
    %248 = vmatprep.mubr.f32.mxu0 0.0
    %249 = vmatmul.mubr.f32.gmra.mrb[0].mxu0 %v69
    %v250 = vpop.f32.mrb[0].mxu0
    %v251 = vadd.f32 %v107, %v250
    %v252 = vpop.f32.mrb[0].mxu0
    %253 = vmatprep.mubr.f32.mxu0 0.0
    %254 = vmatmul.mubr.f32.gmra.mrb[0].mxu0 %v70
    %v255 = vpop.f32.mrb[0].mxu0
    %v256 = vadd.f32 %v107, %v255
    %v257 = vpop.f32.mrb[0].mxu0
    %258 = vmatprep.mubr.f32.mxu0 0.0
    %259 = vmatmul.mubr.f32.gmra.mrb[0].mxu0 %v71
    %v260 = vpop.f32.mrb[0].mxu0
    %v261 = vadd.f32 %v107, %v260
    %v262 = vpop.f32.mrb[0].mxu0
    %263 = vmatprep.mubr.f32.mxu0 0.0
    %264 = vmatmul.mubr.f32.gmra.mrb[0].mxu0 %v72
    %v265 = vpop.f32.mrb[0].mxu0
    %v266 = vadd.f32 %v107, %v265
    %v267 = vpop.f32.mrb[0].mxu0
    %268 = vmatprep.mubr.f32.mxu0 0.0
    %269 = vmatmul.mubr.f32.gmra.mrb[0].mxu0 %v73
    %v270 = vpop.f32.mrb[0].mxu0
    %v271 = vadd.f32 %v107, %v270
    %v272 = vpop.f32.mrb[0].mxu0
    %273 = vmatprep.mubr.f32.mxu0 0.0
    %274 = vmatmul.mubr.f32.gmra.mrb[0].mxu0 %v74
    %v275 = vpop.f32.mrb[0].mxu0
    %v276 = vadd.f32 %v107, %v275
    %v277 = vpop.f32.mrb[0].mxu0
    %278 = vmatprep.mubr.f32.mxu0 0.0
    %279 = vmatmul.mubr.f32.gmra.mrb[0].mxu0 %v75
    %v280 = vpop.f32.mrb[0].mxu0
    %v281 = vadd.f32 %v107, %v280
    %v282 = vpop.f32.mrb[0].mxu0
    %283 = vmatprep.mubr.f32.mxu0 0.0
    %284 = vmatmul.mubr.f32.gmra.mrb[0].mxu0 %v76
    %v285 = vpop.f32.mrb[0].mxu0
    %v286 = vadd.f32 %v107, %v285
    %v287 = vpop.f32.mrb[0].mxu0
    %288 = vmatprep.mubr.f32.mxu0 0.0
    %289 = vmatmul.mubr.f32.gmra.mrb[0].mxu0 %v77
    %v290 = vpop.f32.mrb[0].mxu0
    %v291 = vadd.f32 %v107, %v290
    %v292 = vpop.f32.mrb[0].mxu0
    %293 = vmatprep.mubr.f32.mxu0 0.0
    %294 = vmatmul.mubr.f32.gmra.mrb[0].mxu0 %v78
    %v295 = vpop.f32.mrb[0].mxu0
    %v296 = vadd.f32 %v107, %v295
    %v297 = vpop.f32.mrb[0].mxu0
    %298 = vmatprep.mubr.f32.mxu0 0.0
    %299 = vmatmul.mubr.f32.gmra.mrb[0].mxu0 %v79
    %v300 = vpop.f32.mrb[0].mxu0
    %v301 = vadd.f32 %v107, %v300
    %v302 = vpop.f32.mrb[0].mxu0
    %303 = vmatprep.mubr.f32.mxu0 0.0
    %304 = vmatmul.mubr.f32.gmra.mrb[0].mxu0 %v80
    %v305 = vpop.f32.mrb[0].mxu0
    %v306 = vadd.f32 %v107, %v305
    %v307 = vpop.f32.mrb[0].mxu0
    %308 = vmatprep.mubr.f32.mxu0 0.0
    %309 = vmatmul.mubr.f32.gmra.mrb[0].mxu0 %v81
    %v310 = vpop.f32.mrb[0].mxu0
    %v311 = vadd.f32 %v107, %v310
    %v312 = vpop.f32.mrb[0].mxu0
    %313 = vmatprep.mubr.f32.mxu0 0.0
    %314 = vmatmul.mubr.f32.gmra.mrb[0].mxu0 %v82
    %v315 = vpop.f32.mrb[0].mxu0
    %v316 = vadd.f32 %v107, %v315
    %v317 = vpop.f32.mrb[0].mxu0
    %318 = vmatprep.mubr.f32.mxu0 0.0
    %319 = vmatmul.mubr.f32.gmra.mrb[0].mxu0 %v83
    %v320 = vpop.f32.mrb[0].mxu0
    %v321 = vadd.f32 %v107, %v320
    %v322 = vpop.f32.mrb[0].mxu0
    %323 = vmatprep.mubr.f32.mxu0 0.0
    %324 = vmatmul.mubr.f32.gmra.mrb[0].mxu0 %v84
    %v325 = vpop.f32.mrb[0].mxu0
    %v326 = vadd.f32 %v107, %v325
    %v327 = vpop.f32.mrb[0].mxu0
    %328 = vmatprep.mubr.f32.mxu0 0.0
    %329 = vmatmul.mubr.f32.gmra.mrb[0].mxu0 %v85
    %v330 = vpop.f32.mrb[0].mxu0
    %v331 = vadd.f32 %v107, %v330
    %v332 = vpop.f32.mrb[0].mxu0
    %333 = vdwg.mxu0
    %v334 = vmax.f32 %v176, 0.0
    %v335 = vmax.f32 %v181, 0.0
    %v336 = vmax.f32 %v186, 0.0
    %v337 = vmax.f32 %v191, 0.0
    %v338 = vmax.f32 %v196, 0.0
    %v339 = vmax.f32 %v201, 0.0
    %v340 = vmax.f32 %v206, 0.0
    %v341 = vmax.f32 %v211, 0.0
    %v342 = vmax.f32 %v216, 0.0
    %v343 = vmax.f32 %v221, 0.0
    %v344 = vmax.f32 %v226, 0.0
    %v345 = vmax.f32 %v231, 0.0
    %v346 = vmax.f32 %v236, 0.0
    %v347 = vmax.f32 %v241, 0.0
    %v348 = vmax.f32 %v246, 0.0
    %v349 = vmax.f32 %v251, 0.0
    %v350 = vmax.f32 %v256, 0.0
    %v351 = vmax.f32 %v261, 0.0
    %v352 = vmax.f32 %v266, 0.0
    %v353 = vmax.f32 %v271, 0.0
    %v354 = vmax.f32 %v276, 0.0
    %v355 = vmax.f32 %v281, 0.0
    %v356 = vmax.f32 %v286, 0.0
    %v357 = vmax.f32 %v291, 0.0
    %v358 = vmax.f32 %v296, 0.0
    %v359 = vmax.f32 %v301, 0.0
    %v360 = vmax.f32 %v306, 0.0
    %v361 = vmax.f32 %v311, 0.0
    %v362 = vmax.f32 %v316, 0.0
    %v363 = vmax.f32 %v321, 0.0
    %v364 = vmax.f32 %v326, 0.0
    %v365 = vmax.f32 %v331, 0.0
    %v366 = vmul.f32 %v334, %v334
    %v367 = vmul.f32 %v335, %v335
    %v368 = vmul.f32 %v336, %v336
    %v369 = vmul.f32 %v337, %v337
    %v370 = vmul.f32 %v338, %v338
    %v371 = vmul.f32 %v339, %v339
    %v372 = vmul.f32 %v340, %v340
    %v373 = vmul.f32 %v341, %v341
    %v374 = vmul.f32 %v342, %v342
    %v375 = vmul.f32 %v343, %v343
    %v376 = vmul.f32 %v344, %v344
    %v377 = vmul.f32 %v345, %v345
    %v378 = vmul.f32 %v346, %v346
    %v379 = vmul.f32 %v347, %v347
    %v380 = vmul.f32 %v348, %v348
    %v381 = vmul.f32 %v349, %v349
    %v382 = vmul.f32 %v350, %v350
    %v383 = vmul.f32 %v351, %v351
    %v384 = vmul.f32 %v352, %v352
    %v385 = vmul.f32 %v353, %v353
    %v386 = vmul.f32 %v354, %v354
    %v387 = vmul.f32 %v355, %v355
    %v388 = vmul.f32 %v356, %v356
    %v389 = vmul.f32 %v357, %v357
    %v390 = vmul.f32 %v358, %v358
    %v391 = vmul.f32 %v359, %v359
    %v392 = vmul.f32 %v360, %v360
    %v393 = vmul.f32 %v361, %v361
    %v394 = vmul.f32 %v362, %v362
    %v395 = vmul.f32 %v363, %v363
    %v396 = vmul.f32 %v364, %v364
    %v397 = vmul.f32 %v365, %v365
    %398 = vadd.xlane.f32.xlu0 %v366
    %v399 = vpop.xlane.xlu0 %398
    %400 = vadd.xlane.f32.xlu0 %v367
    %v401 = vpop.xlane.xlu0 %400
    %402 = vadd.xlane.f32.xlu0 %v368
    %v403 = vpop.xlane.xlu0 %402
    %404 = vadd.xlane.f32.xlu0 %v369
    %v405 = vpop.xlane.xlu0 %404
    %406 = vadd.xlane.f32.xlu0 %v370
    %v407 = vpop.xlane.xlu0 %406
    %408 = vadd.xlane.f32.xlu0 %v371
    %v409 = vpop.xlane.xlu0 %408
    %410 = vadd.xlane.f32.xlu0 %v372
    %v411 = vpop.xlane.xlu0 %410
    %412 = vadd.xlane.f32.xlu0 %v373
    %v413 = vpop.xlane.xlu0 %412
    %414 = vadd.xlane.f32.xlu0 %v374
    %v415 = vpop.xlane.xlu0 %414
    %416 = vadd.xlane.f32.xlu0 %v375
    %v417 = vpop.xlane.xlu0 %416
    %418 = vadd.xlane.f32.xlu0 %v376
    %v419 = vpop.xlane.xlu0 %418
    %420 = vadd.xlane.f32.xlu0 %v377
    %v421 = vpop.xlane.xlu0 %420
    %422 = vadd.xlane.f32.xlu0 %v378
    %v423 = vpop.xlane.xlu0 %422
    %424 = vadd.xlane.f32.xlu0 %v379
    %v425 = vpop.xlane.xlu0 %424
    %426 = vadd.xlane.f32.xlu0 %v380
    %v427 = vpop.xlane.xlu0 %426
    %428 = vadd.xlane.f32.xlu0 %v381
    %v429 = vpop.xlane.xlu0 %428
    %430 = vadd.xlane.f32.xlu0 %v382
    %v431 = vpop.xlane.xlu0 %430
    %432 = vadd.xlane.f32.xlu0 %v383
    %v433 = vpop.xlane.xlu0 %432
    %434 = vadd.xlane.f32.xlu0 %v384
    %v435 = vpop.xlane.xlu0 %434
    %436 = vadd.xlane.f32.xlu0 %v385
    %v437 = vpop.xlane.xlu0 %436
    %438 = vadd.xlane.f32.xlu0 %v386
    %v439 = vpop.xlane.xlu0 %438
    %440 = vadd.xlane.f32.xlu0 %v387
    %v441 = vpop.xlane.xlu0 %440
    %442 = vadd.xlane.f32.xlu0 %v388
    %v443 = vpop.xlane.xlu0 %442
    %444 = vadd.xlane.f32.xlu0 %v389
    %v445 = vpop.xlane.xlu0 %444
    %446 = vadd.xlane.f32.xlu0 %v390
    %v447 = vpop.xlane.xlu0 %446
    %448 = vadd.xlane.f32.xlu0 %v391
    %v449 = vpop.xlane.xlu0 %448
    %450 = vadd.xlane.f32.xlu0 %v392
    %v451 = vpop.xlane.xlu0 %450
    %452 = vadd.xlane.f32.xlu0 %v393
    %v453 = vpop.xlane.xlu0 %452
    %454 = vadd.xlane.f32.xlu0 %v394
    %v455 = vpop.xlane.xlu0 %454
    %456 = vadd.xlane.f32.xlu0 %v395
    %v457 = vpop.xlane.xlu0 %456
    %458 = vadd.xlane.f32.xlu0 %v396
    %v459 = vpop.xlane.xlu0 %458
    %460 = vadd.xlane.f32.xlu0 %v397
    %v461 = vpop.xlane.xlu0 %460
    %v462 = vmax.f32 %v399, 1e-24
    %v463 = vmax.f32 %v401, 1e-24
    %v464 = vmax.f32 %v403, 1e-24
    %v465 = vmax.f32 %v405, 1e-24
    %v466 = vmax.f32 %v407, 1e-24
    %v467 = vmax.f32 %v409, 1e-24
    %v468 = vmax.f32 %v411, 1e-24
    %v469 = vmax.f32 %v413, 1e-24
    %v470 = vmax.f32 %v415, 1e-24
    %v471 = vmax.f32 %v417, 1e-24
    %v472 = vmax.f32 %v419, 1e-24
    %v473 = vmax.f32 %v421, 1e-24
    %v474 = vmax.f32 %v423, 1e-24
    %v475 = vmax.f32 %v425, 1e-24
    %v476 = vmax.f32 %v427, 1e-24
    %v477 = vmax.f32 %v429, 1e-24
    %v478 = vmax.f32 %v431, 1e-24
    %v479 = vmax.f32 %v433, 1e-24
    %v480 = vmax.f32 %v435, 1e-24
    %v481 = vmax.f32 %v437, 1e-24
    %v482 = vmax.f32 %v439, 1e-24
    %v483 = vmax.f32 %v441, 1e-24
    %v484 = vmax.f32 %v443, 1e-24
    %v485 = vmax.f32 %v445, 1e-24
    %v486 = vmax.f32 %v447, 1e-24
    %v487 = vmax.f32 %v449, 1e-24
    %v488 = vmax.f32 %v451, 1e-24
    %v489 = vmax.f32 %v453, 1e-24
    %v490 = vmax.f32 %v455, 1e-24
    %v491 = vmax.f32 %v457, 1e-24
    %v492 = vmax.f32 %v459, 1e-24
    %v493 = vmax.f32 %v461, 1e-24
    %v494 = vrsqrt.pop %v462
    %v495 = vrsqrt.pop %v463
    %v496 = vrsqrt.pop %v464
    %v497 = vrsqrt.pop %v465
    %v498 = vrsqrt.pop %v466
    %v499 = vrsqrt.pop %v467
    %v500 = vrsqrt.pop %v468
    %v501 = vrsqrt.pop %v469
    %v502 = vrsqrt.pop %v470
    %v503 = vrsqrt.pop %v471
    %v504 = vrsqrt.pop %v472
    %v505 = vrsqrt.pop %v473
    %v506 = vrsqrt.pop %v474
    %v507 = vrsqrt.pop %v475
    %v508 = vrsqrt.pop %v476
    %v509 = vrsqrt.pop %v477
    %v510 = vrsqrt.pop %v478
    %v511 = vrsqrt.pop %v479
    %v512 = vrsqrt.pop %v480
    %v513 = vrsqrt.pop %v481
    %v514 = vrsqrt.pop %v482
    %v515 = vrsqrt.pop %v483
    %v516 = vrsqrt.pop %v484
    %v517 = vrsqrt.pop %v485
    %v518 = vrsqrt.pop %v486
    %v519 = vrsqrt.pop %v487
    %v520 = vrsqrt.pop %v488
    %v521 = vrsqrt.pop %v489
    %v522 = vrsqrt.pop %v490
    %v523 = vrsqrt.pop %v491
    %v524 = vrsqrt.pop %v492
    %v525 = vrsqrt.pop %v493
    %v526 = vmul.f32 %v334, %v494
    %v527 = vmul.f32 %v335, %v495
    %v528 = vmul.f32 %v336, %v496
    %v529 = vmul.f32 %v337, %v497
    %v530 = vmul.f32 %v338, %v498
    %v531 = vmul.f32 %v339, %v499
    %v532 = vmul.f32 %v340, %v500
    %v533 = vmul.f32 %v341, %v501
    %v534 = vmul.f32 %v342, %v502
    %v535 = vmul.f32 %v343, %v503
    %v536 = vmul.f32 %v344, %v504
    %v537 = vmul.f32 %v345, %v505
    %v538 = vmul.f32 %v346, %v506
    %v539 = vmul.f32 %v347, %v507
    %v540 = vmul.f32 %v348, %v508
    %v541 = vmul.f32 %v349, %v509
    %v542 = vmul.f32 %v350, %v510
    %v543 = vmul.f32 %v351, %v511
    %v544 = vmul.f32 %v352, %v512
    %v545 = vmul.f32 %v353, %v513
    %v546 = vmul.f32 %v354, %v514
    %v547 = vmul.f32 %v355, %v515
    %v548 = vmul.f32 %v356, %v516
    %v549 = vmul.f32 %v357, %v517
    %v550 = vmul.f32 %v358, %v518
    %v551 = vmul.f32 %v359, %v519
    %v552 = vmul.f32 %v360, %v520
    %v553 = vmul.f32 %v361, %v521
    %v554 = vmul.f32 %v362, %v522
    %v555 = vmul.f32 %v363, %v523
    %v556 = vmul.f32 %v364, %v524
    %v557 = vmul.f32 %v365, %v525
    %558 = vst [vmem:[#allocation8] sm:$0xff] %v526
    %559 = vst [vmem:[#allocation8 + $0x8] sm:$0xff] %v527
    %560 = vst [vmem:[#allocation8 + $0x10] sm:$0xff] %v528
    %561 = vst [vmem:[#allocation8 + $0x18] sm:$0xff] %v529
    %562 = vst [vmem:[#allocation8 + $0x20] sm:$0xff] %v530
    %563 = vst [vmem:[#allocation8 + $0x28] sm:$0xff] %v531
    %564 = vst [vmem:[#allocation8 + $0x30] sm:$0xff] %v532
    %565 = vst [vmem:[#allocation8 + $0x38] sm:$0xff] %v533
    %566 = vst [vmem:[#allocation8 + $0x40] sm:$0xff] %v534
    %567 = vst [vmem:[#allocation8 + $0x48] sm:$0xff] %v535
    %568 = vst [vmem:[#allocation8 + $0x50] sm:$0xff] %v536
    %569 = vst [vmem:[#allocation8 + $0x58] sm:$0xff] %v537
    %570 = vst [vmem:[#allocation8 + $0x60] sm:$0xff] %v538
    %571 = vst [vmem:[#allocation8 + $0x68] sm:$0xff] %v539
    %572 = vst [vmem:[#allocation8 + $0x70] sm:$0xff] %v540
    %573 = vst [vmem:[#allocation8 + $0x78] sm:$0xff] %v541
    %574 = vst [vmem:[#allocation8 + $0x80] sm:$0xff] %v542
    %575 = vst [vmem:[#allocation8 + $0x88] sm:$0xff] %v543
    %576 = vst [vmem:[#allocation8 + $0x90] sm:$0xff] %v544
    %577 = vst [vmem:[#allocation8 + $0x98] sm:$0xff] %v545
    %578 = vst [vmem:[#allocation8 + $0xa0] sm:$0xff] %v546
    %579 = vst [vmem:[#allocation8 + $0xa8] sm:$0xff] %v547
    %580 = vst [vmem:[#allocation8 + $0xb0] sm:$0xff] %v548
    %581 = vst [vmem:[#allocation8 + $0xb8] sm:$0xff] %v549
    %582 = vst [vmem:[#allocation8 + $0xc0] sm:$0xff] %v550
    %583 = vst [vmem:[#allocation8 + $0xc8] sm:$0xff] %v551
    %584 = vst [vmem:[#allocation8 + $0xd0] sm:$0xff] %v552
    %585 = vst [vmem:[#allocation8 + $0xd8] sm:$0xff] %v553
    %586 = vst [vmem:[#allocation8 + $0xe0] sm:$0xff] %v554
    %587 = vst [vmem:[#allocation8 + $0xe8] sm:$0xff] %v555
    %588 = vst [vmem:[#allocation8 + $0xf0] sm:$0xff] %v556
    %589 = vst [vmem:[#allocation8 + $0xf8] sm:$0xff] %v557
    // Predicated region
    $region26: #{tpu_custom_call.1} parent=1 // pred_check
      _
    $region27: #{tpu_custom_call.1} parent=1 // pred_check_branch
      %591 = sbr.rel (0) target = $region29
    $region28: #{tpu_custom_call.1} parent=1 // pred_region
      %s593 = ssub.s32 4096, 4096
      %594 = vsyncadd [#allocation4], %s593
      %s595 = sshll.u32 [#allocation8], 4
      %s596 = int_to_ptr.vmem [resolvable:$true] %s595
      %601 = dma.vmem_to_hbm [thread:$0]  %s596, 4096, %s3, [#allocation4], 128, 128, 8
    $region29: #{tpu_custom_call.1} parent=1 // pred_fallthru
      _
    // Predicated region
    $region30: #{tpu_custom_call.1} parent=1 // pred_check
      _
    $region31: #{tpu_custom_call.1} parent=1 // pred_check_branch
      %603 = sbr.rel (0) target = $region33
    $region32: #{tpu_custom_call.1} parent=1 // pred_region
      %604 = dma.done [#allocation4], 4096
    $region33: #{tpu_custom_call.1} parent=1 // pred_fallthru
      _
    %605 = vsyncpa [#allocation3], 1
    %606 = vsyncpa [#allocation6], 1
    %607 = vsyncpa [#allocation4], 1

</llo_original>
